<compile_context>
chip_gen: v7x
topology: tpu7x:2x2x1
jax: 0.10.0
libtpu: 0.0.40
codegen_flags: <defaults>
</compile_context>

<pallas_src>
import functools

import jax
import jax.numpy as jnp
from jax.experimental import pallas as pl
from jax.experimental.pallas import tpu as pltpu


def _round_up(a: int, m: int) -> int:
    return ((a + m - 1) // m) * m


def _choose_tile_t(tokens, hidden, expert_num, topk, x_itemsize, mask_itemsize,
                   vmem_budget_bytes=20 * 1024 * 1024):
    """Pick a token-tile size that keeps the double-buffered pipeline well under a
    conservative VMEM budget on every generation (v7x has only 64 MiB physical VMEM
    per TensorCore).  256-aligned for the v6e/v7x MXU (also a multiple of 128, which
    is all v5e needs)."""
    # Resident (constant block, not double-buffered): gate weight + bias.
    resident = hidden * expert_num * x_itemsize + expert_num * 4
    avail = max(vmem_budget_bytes - resident, 2 * 1024 * 1024)
    # Streamed bytes per token row, x2 for the auto double-buffered pipeline.
    per_row = 2 * (hidden * x_itemsize                     # x tile
                   + expert_num * 4                        # logits out
                   + topk * (x_itemsize + 4)               # weights + selected out
                   + expert_num * topk * mask_itemsize)    # expert_mask out
    per_row += 3 * expert_num * 4                          # f32 working copies (logits^T, work, iota)
    tile = (avail // max(per_row, 1)) // 256 * 256
    tile = max(256, min(tile, 1024))
    return min(tile, _round_up(tokens, 256))               # don't over-pad tiny inputs


def _moe_router_kernel(x_ref, w_ref, b_ref,
                       logits_ref, weights_ref, sel_ref, mask_ref,
                       *, topk: int):
    x = x_ref[...]                        # (Tt, H)
    w = w_ref[...]                        # (H, E)  -- pre-transposed in the wrapper
    b = b_ref[...].astype(jnp.float32)    # (1, E)

    # Gate matmul on the MXU with f32 accumulation (full-rate if caller feeds bf16).
    logits = jnp.dot(x, w, preferred_element_type=jnp.float32) + b   # (Tt, E) f32
    logits_ref[...] = logits.astype(logits_ref.dtype)

    # Switch to token-on-lanes layout: one small (Tt,E)->(E,Tt) transpose; everything
    # downstream (top-k, softmax over selected, expert mask) is then lane-dense with no
    # further cross-lane transposes, and the (K,T) / (E,K,T) outputs are full-lane stores.
    lt = jnp.transpose(logits)            # (E, Tt)
    num_experts = lt.shape[0]

    # Iterative top-k directly on the LOGITS (softmax is monotone, so indices match
    # topk(softmax(logits)); ties resolve to the lowest index, same as the reference).
    row = jax.lax.broadcasted_iota(jnp.int32, lt.shape, 0)
    work = lt
    vals, idxs = [], []
    for _ in range(topk):
        v = jnp.max(work, axis=0, keepdims=True)                          # (1, Tt)
        i = jnp.min(jnp.where(work == v, row, num_experts), axis=0,
                    keepdims=True)                                        # (1, Tt)
        vals.append(v)
        idxs.append(i)
        work = jnp.where(row == i, -jnp.inf, work)

    top_logits = jnp.concatenate(vals, axis=0)    # (K, Tt) f32
    topi = jnp.concatenate(idxs, axis=0)          # (K, Tt) int32

    # Renormalized router weights:
    #   topk(softmax(logits)) / sum(topk(softmax(logits))) == softmax(topk(logits))
    # so only K transcendentals per token are needed instead of E.
    mk = jnp.max(top_logits, axis=0, keepdims=True)
    ew = jnp.exp(top_logits - mk)
    weights_ref[...] = (ew / jnp.sum(ew, axis=0, keepdims=True)).astype(weights_ref.dtype)
    sel_ref[...] = topi.astype(sel_ref.dtype)

    # expert_mask[e, k, t] = (selected_experts[t, k] == e).  topi is already (K, Tt),
    # so this is a pure broadcast-compare: no (T, K) -> (K, T) transpose is needed.
    e_iota = jax.lax.broadcasted_iota(jnp.int32, (num_experts, topk, topi.shape[1]), 0)
    mask_ref[...] = (e_iota == topi[None, :, :]).astype(mask_ref.dtype)


def moe_router(x, gate_w, gate_b, topk, *, mask_dtype=jnp.int8, tile_t=None):
    """x: (T, H); gate_w: (E, H); gate_b: (E,).  Returns the 4 outputs of MOERounter.forward.

    Interface deviations from PyTorch (documented): selected_experts is int32 (not int64)
    and expert_mask defaults to int8 (values are 0/1) to cut HBM writeback 4x; pass
    mask_dtype=jnp.int32 if a downstream consumer needs wider integers.
    """
    T, H = x.shape
    E, H2 = gate_w.shape
    assert H2 == H, "gate weight must be (expert_num, hidden_dim)"
    assert 1 <= topk <= E

    x_itemsize = jnp.dtype(x.dtype).itemsize
    mask_itemsize = jnp.dtype(mask_dtype).itemsize
    if tile_t is None:
        tile_t = _choose_tile_t(T, H, E, topk, x_itemsize, mask_itemsize)
    t_pad = _round_up(T, tile_t)

    # Zero-pad the token dim so every grid block is full (padded rows produce finite
    # logits = bias -> no NaN hazards); sliced off below.
    x_p = jnp.pad(x, ((0, t_pad - T), (0, 0))) if t_pad != T else x
    w_he = gate_w.T                       # (H, E): transposed once outside the kernel (amortized)
    b2d = gate_b.reshape(1, E)

    grid = (t_pad // tile_t,)
    kernel = functools.partial(_moe_router_kernel, topk=topk)

    out_shapes = (
        jax.ShapeDtypeStruct((t_pad, E), jnp.float32),       # router_logits
        jax.ShapeDtypeStruct((topk, t_pad), x.dtype),        # router_weights (token on lanes)
        jax.ShapeDtypeStruct((topk, t_pad), jnp.int32),      # selected_experts (token on lanes)
        jax.ShapeDtypeStruct((E, topk, t_pad), mask_dtype),  # expert_mask (E, K, T)
    )
    in_specs = [
        pl.BlockSpec((tile_t, H), lambda i: (i, 0)),         # x: streamed over token tiles
        pl.BlockSpec((H, E), lambda i: (0, 0)),              # gate weight: VMEM-resident (constant block)
        pl.BlockSpec((1, E), lambda i: (0, 0)),              # gate bias: VMEM-resident
    ]
    out_specs = (
        pl.BlockSpec((tile_t, E), lambda i: (i, 0)),
        pl.BlockSpec((topk, tile_t), lambda i: (0, i)),      # lane-dense: T (128-mult) is the last dim
        pl.BlockSpec((topk, tile_t), lambda i: (0, i)),
        pl.BlockSpec((E, topk, tile_t), lambda i: (0, 0, i)),
    )

    bytes_accessed = (x_p.size * x_itemsize
                      + w_he.size * jnp.dtype(gate_w.dtype).itemsize
                      + b2d.size * jnp.dtype(gate_b.dtype).itemsize
                      + t_pad * E * 4
                      + topk * t_pad * (x_itemsize + 4)
                      + E * topk * t_pad * mask_itemsize)
    cost = pl.CostEstimate(flops=2 * t_pad * H * E,
                           transcendentals=t_pad * topk,
                           bytes_accessed=int(bytes_accessed))

    logits_p, weights_kt, sel_kt, mask_p = pl.pallas_call(
        kernel,
        out_shape=out_shapes,
        grid=grid,
        in_specs=in_specs,
        out_specs=out_specs,
        compiler_params=pltpu.CompilerParams(
            dimension_semantics=("parallel",),       # token tiles shard across TCs on v7x megacore
            vmem_limit_bytes=48 * 1024 * 1024,       # below v7x's 64 MiB physical; raises v5e's 16 MiB default
        ),
        cost_estimate=cost,
    )(x_p, w_he, b2d)

    router_logits = logits_p[:T]
    router_weights = weights_kt.T[:T]     # (T, K): tiny XLA transpose outside the kernel
    selected_experts = sel_kt.T[:T]
    expert_mask = mask_p[:, :, :T]
    return router_logits, router_weights, selected_experts, expert_mask


def _reference(x, gate_w, gate_b, topk):
    logits = x @ gate_w.T + gate_b
    probs = jax.nn.softmax(logits, axis=-1)
    w, sel = jax.lax.top_k(probs, topk)
    w = w / jnp.sum(w, axis=-1, keepdims=True)
    mask = jax.nn.one_hot(sel, gate_w.shape[0], dtype=jnp.int32)   # (T, K, E)
    mask = jnp.transpose(mask, (2, 1, 0))                          # (E, K, T)
    return logits, w.astype(x.dtype), sel.astype(jnp.int32), mask


if __name__ == "__main__":
    # small shapes consistent with the module
    tokens, hidden_dim, expert_num, topk = 8, 32, 8, 2

    key = jax.random.PRNGKey(0)
    kx, kw, kb = jax.random.split(key, 3)
    x = jax.random.normal(kx, (tokens, hidden_dim), dtype=jnp.float32)
    gate_w = jax.random.normal(kw, (expert_num, hidden_dim), dtype=jnp.float32) * 0.1
    gate_b = jax.random.normal(kb, (expert_num,), dtype=jnp.float32) * 0.1

    outs = jax.block_until_ready(moe_router(x, gate_w, gate_b, topk))
    logits, weights, sel, mask = outs

    # sanity check against plain-JAX reference
    r_logits, r_weights, r_sel, r_mask = _reference(x, gate_w, gate_b, topk)
    assert logits.shape == (tokens, expert_num)
    assert weights.shape == (tokens, topk)
    assert sel.shape == (tokens, topk)
    assert mask.shape == (expert_num, topk, tokens)
    assert jnp.allclose(logits, r_logits, atol=1e-4), "logits mismatch"
    assert jnp.allclose(weights, r_weights, atol=1e-4), "weights mismatch"
    assert jnp.array_equal(sel, r_sel), "selected_experts mismatch"
    assert jnp.array_equal(mask.astype(jnp.int32), r_mask), "expert_mask mismatch"

    print("KERNEL_OK")
</pallas_src>

<mosaic_0001>
module attributes {stable_mosaic.version = 11 : i64} {
  func.func @_moe_router_kernel(%arg0: i32, %arg1: memref<256x32xf32, #tpu.memory_space<vmem>>, %arg2: memref<32x8xf32, #tpu.memory_space<vmem>>, %arg3: memref<1x8xf32, #tpu.memory_space<vmem>>, %arg4: memref<256x8xf32, #tpu.memory_space<vmem>>, %arg5: memref<2x256xf32, #tpu.memory_space<vmem>>, %arg6: memref<2x256xi32, #tpu.memory_space<vmem>>, %arg7: memref<8x2x256xi8, #tpu.memory_space<vmem>>) attributes {dimension_semantics = [#tpu.dimension_semantics<parallel>], iteration_bounds = array<i64: 1>, scalar_prefetch = 0 : i64, scratch_operands = 0 : i64, tpu.core_type = #tpu.core_type<tc>, window_params = [{transform_indices = @transform_0, window_bounds = array<i64: 256, 32>}, {pipeline_mode = #tpu.pipeline_mode<synchronous>, transform_indices = @transform_1, window_bounds = array<i64: 32, 8>}, {pipeline_mode = #tpu.pipeline_mode<synchronous>, transform_indices = @transform_2, window_bounds = array<i64: 1, 8>}, {transform_indices = @transform_3, window_bounds = array<i64: 256, 8>}, {transform_indices = @transform_4, window_bounds = array<i64: 2, 256>}, {transform_indices = @transform_5, window_bounds = array<i64: 2, 256>}, {transform_indices = @transform_6, window_bounds = array<i64: 8, 2, 256>}]} {
    %c0 = arith.constant 0 : index
    %c0_0 = arith.constant 0 : index
    %0 = vector.load %arg1[%c0, %c0_0] : memref<256x32xf32, #tpu.memory_space<vmem>>, vector<256x32xf32>
    %c0_1 = arith.constant 0 : index
    %c0_2 = arith.constant 0 : index
    %1 = vector.load %arg2[%c0_1, %c0_2] : memref<32x8xf32, #tpu.memory_space<vmem>>, vector<32x8xf32>
    %c0_3 = arith.constant 0 : index
    %c0_4 = arith.constant 0 : index
    %2 = vector.load %arg3[%c0_3, %c0_4] : memref<1x8xf32, #tpu.memory_space<vmem>>, vector<1x8xf32>
    %cst = arith.constant dense<0.000000e+00> : vector<256x8xf32>
    %3 = tpu.matmul %0, %1, %cst {dimension_numbers = #tpu.dot_dimension_numbers<[1], [0], [0], [1], [0, 0, 1, 1], [], []>} : vector<256x32xf32>, vector<32x8xf32>, vector<256x8xf32> -> vector<256x8xf32>
    %4 = vector.broadcast %2 : vector<1x8xf32> to vector<256x8xf32>
    %5 = arith.addf %3, %4 : vector<256x8xf32>
    %c0_5 = arith.constant 0 : index
    %c0_6 = arith.constant 0 : index
    %6 = vector.load %arg4[%c0_5, %c0_6] : memref<256x8xf32, #tpu.memory_space<vmem>>, vector<256x8xf32>
    tpu.vector_store %arg4[%c0_5, %c0_6], %5 {strides = array<i32>} : memref<256x8xf32, #tpu.memory_space<vmem>>, vector<256x8xf32>,
    %7 = tpu.transpose %5, [1, 0] : vector<256x8xf32> -> vector<8x256xf32>
    %8 = tpu.iota {dimensions = array<i32: 0>} : vector<8x256xi32>
    %cst_7 = arith.constant dense<0xFF800000> : vector<256xf32>
    %9 = vector.multi_reduction <maximumf>, %7, %cst_7 [0] : vector<8x256xf32> to vector<256xf32>
    %10 = vector.shape_cast %9 : vector<256xf32> to vector<1x256xf32>
    %11 = vector.broadcast %10 : vector<1x256xf32> to vector<8x256xf32>
    %12 = arith.cmpf oeq, %7, %11 : vector<8x256xf32>
    %c8_i32 = arith.constant 8 : i32
    %13 = vector.broadcast %c8_i32 : i32 to vector<8x256xi32>
    %14 = arith.select %12, %8, %13 : vector<8x256xi1>, vector<8x256xi32>
    %cst_8 = arith.constant dense<2147483647> : vector<256xi32>
    %15 = vector.multi_reduction <minsi>, %14, %cst_8 [0] : vector<8x256xi32> to vector<256xi32>
    %16 = vector.shape_cast %15 : vector<256xi32> to vector<1x256xi32>
    %17 = vector.broadcast %16 : vector<1x256xi32> to vector<8x256xi32>
    %18 = arith.cmpi eq, %8, %17 : vector<8x256xi32>
    %cst_9 = arith.constant 0xFF800000 : f32
    %19 = vector.broadcast %cst_9 : f32 to vector<8x256xf32>
    %20 = arith.select %18, %19, %7 : vector<8x256xi1>, vector<8x256xf32>
    %cst_10 = arith.constant dense<0xFF800000> : vector<256xf32>
    %21 = vector.multi_reduction <maximumf>, %20, %cst_10 [0] : vector<8x256xf32> to vector<256xf32>
    %22 = vector.shape_cast %21 : vector<256xf32> to vector<1x256xf32>
    %23 = vector.broadcast %22 : vector<1x256xf32> to vector<8x256xf32>
    %24 = arith.cmpf oeq, %20, %23 : vector<8x256xf32>
    %c8_i32_11 = arith.constant 8 : i32
    %25 = vector.broadcast %c8_i32_11 : i32 to vector<8x256xi32>
    %26 = arith.select %24, %8, %25 : vector<8x256xi1>, vector<8x256xi32>
    %cst_12 = arith.constant dense<2147483647> : vector<256xi32>
    %27 = vector.multi_reduction <minsi>, %26, %cst_12 [0] : vector<8x256xi32> to vector<256xi32>
    %28 = vector.shape_cast %27 : vector<256xi32> to vector<1x256xi32>
    %29 = tpu.concatenate %10, %22 in 0 : vector<1x256xf32>, vector<1x256xf32> -> vector<2x256xf32>
    %30 = tpu.concatenate %16, %28 in 0 : vector<1x256xi32>, vector<1x256xi32> -> vector<2x256xi32>
    %cst_13 = arith.constant dense<0xFF800000> : vector<256xf32>
    %31 = vector.multi_reduction <maximumf>, %29, %cst_13 [0] : vector<2x256xf32> to vector<256xf32>
    %32 = vector.shape_cast %31 : vector<256xf32> to vector<1x256xf32>
    %33 = vector.broadcast %32 : vector<1x256xf32> to vector<2x256xf32>
    %34 = arith.subf %29, %33 : vector<2x256xf32>
    %35 = math.exp %34 : vector<2x256xf32>
    %cst_14 = arith.constant dense<0.000000e+00> : vector<256xf32>
    %36 = vector.multi_reduction <add>, %35, %cst_14 [0] : vector<2x256xf32> to vector<256xf32>
    %37 = vector.shape_cast %36 : vector<256xf32> to vector<1x256xf32>
    %38 = vector.broadcast %37 : vector<1x256xf32> to vector<2x256xf32>
    %39 = arith.divf %35, %38 : vector<2x256xf32>
    %c0_15 = arith.constant 0 : index
    %c0_16 = arith.constant 0 : index
    %40 = vector.load %arg5[%c0_15, %c0_16] : memref<2x256xf32, #tpu.memory_space<vmem>>, vector<2x256xf32>
    tpu.vector_store %arg5[%c0_15, %c0_16], %39 {strides = array<i32>} : memref<2x256xf32, #tpu.memory_space<vmem>>, vector<2x256xf32>,
    %c0_17 = arith.constant 0 : index
    %c0_18 = arith.constant 0 : index
    %41 = vector.load %arg6[%c0_17, %c0_18] : memref<2x256xi32, #tpu.memory_space<vmem>>, vector<2x256xi32>
    tpu.vector_store %arg6[%c0_17, %c0_18], %30 {strides = array<i32>} : memref<2x256xi32, #tpu.memory_space<vmem>>, vector<2x256xi32>,
    %42 = tpu.iota {dimensions = array<i32: 0>} : vector<8x2x256xi32>
    %43 = vector.shape_cast %30 : vector<2x256xi32> to vector<1x2x256xi32>
    %44 = vector.broadcast %43 : vector<1x2x256xi32> to vector<8x2x256xi32>
    %45 = arith.cmpi eq, %42, %44 : vector<8x2x256xi32>
    %46 = arith.extui %45 : vector<8x2x256xi1> to vector<8x2x256xi8>
    %c0_19 = arith.constant 0 : index
    %c0_20 = arith.constant 0 : index
    %c0_21 = arith.constant 0 : index
    %47 = vector.load %arg7[%c0_19, %c0_20, %c0_21] : memref<8x2x256xi8, #tpu.memory_space<vmem>>, vector<8x2x256xi8>
    tpu.vector_store %arg7[%c0_19, %c0_20, %c0_21], %46 {strides = array<i32>} : memref<8x2x256xi8, #tpu.memory_space<vmem>>, vector<8x2x256xi8>,
    return
  }
  func.func @transform_0(%arg0: i32) -> (i32, i32) {
    %c0_i32 = arith.constant 0 : i32
    %c0_i32_0 = arith.constant 0 : i32
    return %arg0, %c0_i32 : i32, i32
  }
  func.func @transform_1(%arg0: i32) -> (i32, i32) {
    %c0_i32 = arith.constant 0 : i32
    %c0_i32_0 = arith.constant 0 : i32
    %c0_i32_1 = arith.constant 0 : i32
    return %c0_i32, %c0_i32_0 : i32, i32
  }
  func.func @transform_2(%arg0: i32) -> (i32, i32) {
    %c0_i32 = arith.constant 0 : i32
    %c0_i32_0 = arith.constant 0 : i32
    %c0_i32_1 = arith.constant 0 : i32
    return %c0_i32, %c0_i32_0 : i32, i32
  }
  func.func @transform_3(%arg0: i32) -> (i32, i32) {
    %c0_i32 = arith.constant 0 : i32
    %c0_i32_0 = arith.constant 0 : i32
    return %arg0, %c0_i32 : i32, i32
  }
  func.func @transform_4(%arg0: i32) -> (i32, i32) {
    %c0_i32 = arith.constant 0 : i32
    %c0_i32_0 = arith.constant 0 : i32
    return %c0_i32, %arg0 : i32, i32
  }
  func.func @transform_5(%arg0: i32) -> (i32, i32) {
    %c0_i32 = arith.constant 0 : i32
    %c0_i32_0 = arith.constant 0 : i32
    return %c0_i32, %arg0 : i32, i32
  }
  func.func @transform_6(%arg0: i32) -> (i32, i32, i32) {
    %c0_i32 = arith.constant 0 : i32
    %c0_i32_0 = arith.constant 0 : i32
    %c0_i32_1 = arith.constant 0 : i32
    return %c0_i32, %c0_i32_0, %arg0 : i32, i32, i32
  }
}

</mosaic_0001>

<llo_original>
// kernel: tpu_custom_call.1
$region0: #{tpu_custom_call.1}
  #allocation0 [shape = 'u32[]', space=smem, size = 0x4, offset = 0x4, fixed_abs, tag = 'smem constant byte address 0x4 - core index']
  #allocation1 [shape = 'u32[144,128]{1,0:T(1,128)}', space=vmem, size = 0x12000, scoped, tag = 'internal scratch']
  %s0 = inlined_call_operand.vmem [shape: f32[256,32], index: 0, kind: input, shape index: {}]
  %s1 = inlined_call_operand.vmem [shape: f32[32,8], index: 1, kind: input, shape index: {}]
  %s2 = inlined_call_operand.vmem [shape: f32[1,8], index: 2, kind: input, shape index: {}]
  %s3 = inlined_call_operand.vmem [shape: f32[256,8], index: 3, kind: output, shape index: {0}]
  %s4 = inlined_call_operand.hbm [shape: f32[2,256], index: 4, kind: output, shape index: {1}]
  %s5 = inlined_call_operand.hbm [shape: s32[2,256], index: 5, kind: output, shape index: {2}]
  %s6 = inlined_call_operand.vmem [shape: s8[8,2,256], index: 6, kind: output, shape index: {3}]
  %7 = xla_tuple %s3, %s4, %s5, %s6
  %s8 = sld [smem:[#allocation0]]
  $region46: #{tpu_custom_call.1} parent=0
    _
  %s10 = ssub.s32 1, %s8
  %s11 = scalar_select 0, %s10, %s8
  $region1: #{tpu_custom_call.1} parent=0
    #allocation2 [shape = 'u8[2048]{0}', space=vmem, size = 0x800, scoped, tag = 'output window, operand 1, single buffered']
    #allocation3 [shape = 's32[1]{0}', space=sflag, size = 0x4, scoped, tag = 'scoped memory for tpu_custom_call.1']
    #allocation4 [shape = 'u8[2048]{0}', space=vmem, size = 0x800, scoped, tag = 'output window, operand 2, single buffered']
    #allocation5 [shape = 's32[1]{0}', space=sflag, size = 0x4, scoped, tag = 'scoped memory for tpu_custom_call.1']
    %12 = vsyncpa [#allocation3], 0
    %13 = vsyncpa [#allocation5], 0
    // Predicated region
    $region2: #{tpu_custom_call.1} parent=1 // pred_check
      _
    $region3: #{tpu_custom_call.1} parent=1 // pred_check_branch
      %15 = sbr.rel (0) target = $region5
    $region4: #{tpu_custom_call.1} parent=1 // pred_region
      _
    $region5: #{tpu_custom_call.1} parent=1 // pred_fallthru
      _
    // Predicated region
    $region6: #{tpu_custom_call.1} parent=1 // pred_check
      _
    $region7: #{tpu_custom_call.1} parent=1 // pred_check_branch
      %17 = sbr.rel (0) target = $region9
    $region8: #{tpu_custom_call.1} parent=1 // pred_region
      _
    $region9: #{tpu_custom_call.1} parent=1 // pred_fallthru
      _
    // Predicated region
    $region10: #{tpu_custom_call.1} parent=1 // pred_check
      _
    $region11: #{tpu_custom_call.1} parent=1 // pred_check_branch
      %19 = sbr.rel (0) target = $region13
    $region12: #{tpu_custom_call.1} parent=1 // pred_region
      _
    $region13: #{tpu_custom_call.1} parent=1 // pred_fallthru
      _
    %v22 = vld [vmem:[%s0] sm:$0xff]
    %v23 = vld [vmem:[%s0 + $0x8] sm:$0xff]
    %v24 = vld [vmem:[%s0 + $0x10] sm:$0xff]
    %v25 = vld [vmem:[%s0 + $0x18] sm:$0xff]
    %v26 = vld [vmem:[%s0 + $0x20] sm:$0xff]
    %v27 = vld [vmem:[%s0 + $0x28] sm:$0xff]
    %v28 = vld [vmem:[%s0 + $0x30] sm:$0xff]
    %v29 = vld [vmem:[%s0 + $0x38] sm:$0xff]
    %v30 = vld [vmem:[%s0 + $0x40] sm:$0xff]
    %v31 = vld [vmem:[%s0 + $0x48] sm:$0xff]
    %v32 = vld [vmem:[%s0 + $0x50] sm:$0xff]
    %v33 = vld [vmem:[%s0 + $0x58] sm:$0xff]
    %v34 = vld [vmem:[%s0 + $0x60] sm:$0xff]
    %v35 = vld [vmem:[%s0 + $0x68] sm:$0xff]
    %v36 = vld [vmem:[%s0 + $0x70] sm:$0xff]
    %v37 = vld [vmem:[%s0 + $0x78] sm:$0xff]
    %v38 = vld [vmem:[%s0 + $0x80] sm:$0xff]
    %v39 = vld [vmem:[%s0 + $0x88] sm:$0xff]
    %v40 = vld [vmem:[%s0 + $0x90] sm:$0xff]
    %v41 = vld [vmem:[%s0 + $0x98] sm:$0xff]
    %v42 = vld [vmem:[%s0 + $0xa0] sm:$0xff]
    %v43 = vld [vmem:[%s0 + $0xa8] sm:$0xff]
    %v44 = vld [vmem:[%s0 + $0xb0] sm:$0xff]
    %v45 = vld [vmem:[%s0 + $0xb8] sm:$0xff]
    %v46 = vld [vmem:[%s0 + $0xc0] sm:$0xff]
    %v47 = vld [vmem:[%s0 + $0xc8] sm:$0xff]
    %v48 = vld [vmem:[%s0 + $0xd0] sm:$0xff]
    %v49 = vld [vmem:[%s0 + $0xd8] sm:$0xff]
    %v50 = vld [vmem:[%s0 + $0xe0] sm:$0xff]
    %v51 = vld [vmem:[%s0 + $0xe8] sm:$0xff]
    %v52 = vld [vmem:[%s0 + $0xf0] sm:$0xff]
    %v53 = vld [vmem:[%s0 + $0xf8] sm:$0xff]
    %v54 = vld [vmem:[%s1] sm:$0xff]
    %v55 = vld [vmem:[%s1 + $0x8] sm:$0xff]
    %v56 = vld [vmem:[%s1 + $0x10] sm:$0xff]
    %v57 = vld [vmem:[%s1 + $0x18] sm:$0xff]
    %v58 = vld [vmem:[%s2] sm:$0x1]
    %v60 = vlaneseq
    %v61 = vshrl.u32 %v60, 7
    %v62 = vsub.s32 0, %v61
    %v63 = vrot.slane %v58, %v62
    %vm65 = vcmask 261120
    %v67 = vsel %vm65, %v22, 0
    %v70 = vsel %vm65, %v23, 0
    %v73 = vsel %vm65, %v24, 0
    %v76 = vsel %vm65, %v25, 0
    %v79 = vsel %vm65, %v26, 0
    %v82 = vsel %vm65, %v27, 0
    %v85 = vsel %vm65, %v28, 0
    %v88 = vsel %vm65, %v29, 0
    %v91 = vsel %vm65, %v30, 0
    %v94 = vsel %vm65, %v31, 0
    %v97 = vsel %vm65, %v32, 0
    %v100 = vsel %vm65, %v33, 0
    %v103 = vsel %vm65, %v34, 0
    %v106 = vsel %vm65, %v35, 0
    %v109 = vsel %vm65, %v36, 0
    %v112 = vsel %vm65, %v37, 0
    %v115 = vsel %vm65, %v38, 0
    %v118 = vsel %vm65, %v39, 0
    %v121 = vsel %vm65, %v40, 0
    %v124 = vsel %vm65, %v41, 0
    %v127 = vsel %vm65, %v42, 0
    %v130 = vsel %vm65, %v43, 0
    %v133 = vsel %vm65, %v44, 0
    %v136 = vsel %vm65, %v45, 0
    %v139 = vsel %vm65, %v46, 0
    %v142 = vsel %vm65, %v47, 0
    %v145 = vsel %vm65, %v48, 0
    %v148 = vsel %vm65, %v49, 0
    %v151 = vsel %vm65, %v50, 0
    %v154 = vsel %vm65, %v51, 0
    %v157 = vsel %vm65, %v52, 0
    %v160 = vsel %vm65, %v53, 0
    %162 = vmatprep.subr.mxu0 0.0
    %163 = vmatpush1.msra.mxu0 %v54
    %164 = vmatprep.subr.mxu0 0.0
    %165 = vmatpush1.msra.mxu0 %v55
    %166 = vmatprep.subr.mxu0 0.0
    %167 = vmatpush1.msra.mxu0 %v56
    %168 = vmatprep.subr.mxu0 0.0
    %169 = vmatpush1.msra.mxu0 %v57
    %170 = vmatprep.subr.mxu0 0.0
    %171 = vmatpush1.msra.mxu0 0.0
    %172 = vmatprep.subr.mxu0 0.0
    %173 = vmatpush1.msra.mxu0 0.0
    %174 = vmatprep.subr.mxu0 0.0
    %175 = vmatpush1.msra.mxu0 0.0
    %176 = vmatprep.subr.mxu0 0.0
    %177 = vmatpush1.msra.mxu0 0.0
    %178 = vmatprep.subr.mxu0 0.0
    %179 = vmatpush1.msra.mxu0 0.0
    %180 = vmatprep.subr.mxu0 0.0
    %181 = vmatpush1.msra.mxu0 0.0
    %182 = vmatprep.subr.mxu0 0.0
    %183 = vmatpush1.msra.mxu0 0.0
    %184 = vmatprep.subr.mxu0 0.0
    %185 = vmatpush1.msra.mxu0 0.0
    %186 = vmatprep.subr.mxu0 0.0
    %187 = vmatpush1.msra.mxu0 0.0
    %188 = vmatprep.subr.mxu0 0.0
    %189 = vmatpush1.msra.mxu0 0.0
    %190 = vmatprep.subr.mxu0 0.0
    %191 = vmatpush1.msra.mxu0 0.0
    %192 = vmatprep.subr.mxu0 0.0
    %193 = vmatpush1.msra.mxu0 0.0
    %194 = vmatprep.subr.mxu0 0.0
    %195 = vmatpush1.msra.mxu0 0.0
    %196 = vmatprep.subr.mxu0 0.0
    %197 = vmatpush1.msra.mxu0 0.0
    %198 = vmatprep.subr.mxu0 0.0
    %199 = vmatpush1.msra.mxu0 0.0
    %200 = vmatprep.subr.mxu0 0.0
    %201 = vmatpush1.msra.mxu0 0.0
    %202 = vmatprep.subr.mxu0 0.0
    %203 = vmatpush1.msra.mxu0 0.0
    %204 = vmatprep.subr.mxu0 0.0
    %205 = vmatpush1.msra.mxu0 0.0
    %206 = vmatprep.subr.mxu0 0.0
    %207 = vmatpush1.msra.mxu0 0.0
    %208 = vmatprep.subr.mxu0 0.0
    %209 = vmatpush1.msra.mxu0 0.0
    %210 = vmatprep.subr.mxu0 0.0
    %211 = vmatpush1.msra.mxu0 0.0
    %212 = vmatprep.subr.mxu0 0.0
    %213 = vmatpush1.msra.mxu0 0.0
    %214 = vmatprep.subr.mxu0 0.0
    %215 = vmatpush1.msra.mxu0 0.0
    %216 = vmatprep.subr.mxu0 0.0
    %217 = vmatpush1.msra.mxu0 0.0
    %218 = vmatprep.subr.mxu0 0.0
    %219 = vmatpush1.msra.mxu0 0.0
    %220 = vmatprep.subr.mxu0 0.0
    %221 = vmatpush1.msra.mxu0 0.0
    %222 = vmatprep.subr.mxu0 0.0
    %223 = vmatpush1.msra.mxu0 0.0
    %224 = vmatprep.subr.mxu0 0.0
    %225 = vmatpush1.msra.mxu0 0.0
    %226 = vmatprep.mubr.f32.mxu0 0.0
    %227 = vmatmul.mubr.f32.gmra.mrb[0].mxu0 %v67
    %v228 = vpop.f32.mrb[0].mxu0
    %v229 = vadd.f32 %v63, %v228
    %v230 = vpop.f32.mrb[0].mxu0
    %231 = vmatprep.mubr.f32.mxu0 0.0
    %232 = vmatmul.mubr.f32.gmra.mrb[0].mxu0 %v70
    %v233 = vpop.f32.mrb[0].mxu0
    %v234 = vadd.f32 %v63, %v233
    %v235 = vpop.f32.mrb[0].mxu0
    %236 = vmatprep.mubr.f32.mxu0 0.0
    %237 = vmatmul.mubr.f32.gmra.mrb[0].mxu0 %v73
    %v238 = vpop.f32.mrb[0].mxu0
    %v239 = vadd.f32 %v63, %v238
    %v240 = vpop.f32.mrb[0].mxu0
    %241 = vmatprep.mubr.f32.mxu0 0.0
    %242 = vmatmul.mubr.f32.gmra.mrb[0].mxu0 %v76
    %v243 = vpop.f32.mrb[0].mxu0
    %v244 = vadd.f32 %v63, %v243
    %v245 = vpop.f32.mrb[0].mxu0
    %246 = vmatprep.mubr.f32.mxu0 0.0
    %247 = vmatmul.mubr.f32.gmra.mrb[0].mxu0 %v79
    %v248 = vpop.f32.mrb[0].mxu0
    %v249 = vadd.f32 %v63, %v248
    %v250 = vpop.f32.mrb[0].mxu0
    %251 = vmatprep.mubr.f32.mxu0 0.0
    %252 = vmatmul.mubr.f32.gmra.mrb[0].mxu0 %v82
    %v253 = vpop.f32.mrb[0].mxu0
    %v254 = vadd.f32 %v63, %v253
    %v255 = vpop.f32.mrb[0].mxu0
    %256 = vmatprep.mubr.f32.mxu0 0.0
    %257 = vmatmul.mubr.f32.gmra.mrb[0].mxu0 %v85
    %v258 = vpop.f32.mrb[0].mxu0
    %v259 = vadd.f32 %v63, %v258
    %v260 = vpop.f32.mrb[0].mxu0
    %261 = vmatprep.mubr.f32.mxu0 0.0
    %262 = vmatmul.mubr.f32.gmra.mrb[0].mxu0 %v88
    %v263 = vpop.f32.mrb[0].mxu0
    %v264 = vadd.f32 %v63, %v263
    %v265 = vpop.f32.mrb[0].mxu0
    %266 = vmatprep.mubr.f32.mxu0 0.0
    %267 = vmatmul.mubr.f32.gmra.mrb[0].mxu0 %v91
    %v268 = vpop.f32.mrb[0].mxu0
    %v269 = vadd.f32 %v63, %v268
    %v270 = vpop.f32.mrb[0].mxu0
    %271 = vmatprep.mubr.f32.mxu0 0.0
    %272 = vmatmul.mubr.f32.gmra.mrb[0].mxu0 %v94
    %v273 = vpop.f32.mrb[0].mxu0
    %v274 = vadd.f32 %v63, %v273
    %v275 = vpop.f32.mrb[0].mxu0
    %276 = vmatprep.mubr.f32.mxu0 0.0
    %277 = vmatmul.mubr.f32.gmra.mrb[0].mxu0 %v97
    %v278 = vpop.f32.mrb[0].mxu0
    %v279 = vadd.f32 %v63, %v278
    %v280 = vpop.f32.mrb[0].mxu0
    %281 = vmatprep.mubr.f32.mxu0 0.0
    %282 = vmatmul.mubr.f32.gmra.mrb[0].mxu0 %v100
    %v283 = vpop.f32.mrb[0].mxu0
    %v284 = vadd.f32 %v63, %v283
    %v285 = vpop.f32.mrb[0].mxu0
    %286 = vmatprep.mubr.f32.mxu0 0.0
    %287 = vmatmul.mubr.f32.gmra.mrb[0].mxu0 %v103
    %v288 = vpop.f32.mrb[0].mxu0
    %v289 = vadd.f32 %v63, %v288
    %v290 = vpop.f32.mrb[0].mxu0
    %291 = vmatprep.mubr.f32.mxu0 0.0
    %292 = vmatmul.mubr.f32.gmra.mrb[0].mxu0 %v106
    %v293 = vpop.f32.mrb[0].mxu0
    %v294 = vadd.f32 %v63, %v293
    %v295 = vpop.f32.mrb[0].mxu0
    %296 = vmatprep.mubr.f32.mxu0 0.0
    %297 = vmatmul.mubr.f32.gmra.mrb[0].mxu0 %v109
    %v298 = vpop.f32.mrb[0].mxu0
    %v299 = vadd.f32 %v63, %v298
    %v300 = vpop.f32.mrb[0].mxu0
    %301 = vmatprep.mubr.f32.mxu0 0.0
    %302 = vmatmul.mubr.f32.gmra.mrb[0].mxu0 %v112
    %v303 = vpop.f32.mrb[0].mxu0
    %v304 = vadd.f32 %v63, %v303
    %v305 = vpop.f32.mrb[0].mxu0
    %306 = vmatprep.mubr.f32.mxu0 0.0
    %307 = vmatmul.mubr.f32.gmra.mrb[0].mxu0 %v115
    %v308 = vpop.f32.mrb[0].mxu0
    %v309 = vadd.f32 %v63, %v308
    %v310 = vpop.f32.mrb[0].mxu0
    %311 = vmatprep.mubr.f32.mxu0 0.0
    %312 = vmatmul.mubr.f32.gmra.mrb[0].mxu0 %v118
    %v313 = vpop.f32.mrb[0].mxu0
    %v314 = vadd.f32 %v63, %v313
    %v315 = vpop.f32.mrb[0].mxu0
    %316 = vmatprep.mubr.f32.mxu0 0.0
    %317 = vmatmul.mubr.f32.gmra.mrb[0].mxu0 %v121
    %v318 = vpop.f32.mrb[0].mxu0
    %v319 = vadd.f32 %v63, %v318
    %v320 = vpop.f32.mrb[0].mxu0
    %321 = vmatprep.mubr.f32.mxu0 0.0
    %322 = vmatmul.mubr.f32.gmra.mrb[0].mxu0 %v124
    %v323 = vpop.f32.mrb[0].mxu0
    %v324 = vadd.f32 %v63, %v323
    %v325 = vpop.f32.mrb[0].mxu0
    %326 = vmatprep.mubr.f32.mxu0 0.0
    %327 = vmatmul.mubr.f32.gmra.mrb[0].mxu0 %v127
    %v328 = vpop.f32.mrb[0].mxu0
    %v329 = vadd.f32 %v63, %v328
    %v330 = vpop.f32.mrb[0].mxu0
    %331 = vmatprep.mubr.f32.mxu0 0.0
    %332 = vmatmul.mubr.f32.gmra.mrb[0].mxu0 %v130
    %v333 = vpop.f32.mrb[0].mxu0
    %v334 = vadd.f32 %v63, %v333
    %v335 = vpop.f32.mrb[0].mxu0
    %336 = vmatprep.mubr.f32.mxu0 0.0
    %337 = vmatmul.mubr.f32.gmra.mrb[0].mxu0 %v133
    %v338 = vpop.f32.mrb[0].mxu0
    %v339 = vadd.f32 %v63, %v338
    %v340 = vpop.f32.mrb[0].mxu0
    %341 = vmatprep.mubr.f32.mxu0 0.0
    %342 = vmatmul.mubr.f32.gmra.mrb[0].mxu0 %v136
    %v343 = vpop.f32.mrb[0].mxu0
    %v344 = vadd.f32 %v63, %v343
    %v345 = vpop.f32.mrb[0].mxu0
    %346 = vmatprep.mubr.f32.mxu0 0.0
    %347 = vmatmul.mubr.f32.gmra.mrb[0].mxu0 %v139
    %v348 = vpop.f32.mrb[0].mxu0
    %v349 = vadd.f32 %v63, %v348
    %v350 = vpop.f32.mrb[0].mxu0
    %351 = vmatprep.mubr.f32.mxu0 0.0
    %352 = vmatmul.mubr.f32.gmra.mrb[0].mxu0 %v142
    %v353 = vpop.f32.mrb[0].mxu0
    %v354 = vadd.f32 %v63, %v353
    %v355 = vpop.f32.mrb[0].mxu0
    %356 = vmatprep.mubr.f32.mxu0 0.0
    %357 = vmatmul.mubr.f32.gmra.mrb[0].mxu0 %v145
    %v358 = vpop.f32.mrb[0].mxu0
    %v359 = vadd.f32 %v63, %v358
    %v360 = vpop.f32.mrb[0].mxu0
    %361 = vmatprep.mubr.f32.mxu0 0.0
    %362 = vmatmul.mubr.f32.gmra.mrb[0].mxu0 %v148
    %v363 = vpop.f32.mrb[0].mxu0
    %v364 = vadd.f32 %v63, %v363
    %v365 = vpop.f32.mrb[0].mxu0
    %366 = vmatprep.mubr.f32.mxu0 0.0
    %367 = vmatmul.mubr.f32.gmra.mrb[0].mxu0 %v151
    %v368 = vpop.f32.mrb[0].mxu0
    %v369 = vadd.f32 %v63, %v368
    %v370 = vpop.f32.mrb[0].mxu0
    %371 = vmatprep.mubr.f32.mxu0 0.0
    %372 = vmatmul.mubr.f32.gmra.mrb[0].mxu0 %v154
    %v373 = vpop.f32.mrb[0].mxu0
    %v374 = vadd.f32 %v63, %v373
    %v375 = vpop.f32.mrb[0].mxu0
    %376 = vmatprep.mubr.f32.mxu0 0.0
    %377 = vmatmul.mubr.f32.gmra.mrb[0].mxu0 %v157
    %v378 = vpop.f32.mrb[0].mxu0
    %v379 = vadd.f32 %v63, %v378
    %v380 = vpop.f32.mrb[0].mxu0
    %381 = vmatprep.mubr.f32.mxu0 0.0
    %382 = vmatmul.mubr.f32.gmra.mrb[0].mxu0 %v160
    %v383 = vpop.f32.mrb[0].mxu0
    %v384 = vadd.f32 %v63, %v383
    %v385 = vpop.f32.mrb[0].mxu0
    %386 = vdwg.mxu0
    %vm387 = vcmask 64512
    %388 = vst.msk [vmem:[%s3] sm:$0xff] %vm387, %v229
    %389 = vst.msk [vmem:[%s3 + $0x8] sm:$0xff] %vm387, %v234
    %390 = vst.msk [vmem:[%s3 + $0x10] sm:$0xff] %vm387, %v239
    %391 = vst.msk [vmem:[%s3 + $0x18] sm:$0xff] %vm387, %v244
    %392 = vst.msk [vmem:[%s3 + $0x20] sm:$0xff] %vm387, %v249
    %393 = vst.msk [vmem:[%s3 + $0x28] sm:$0xff] %vm387, %v254
    %394 = vst.msk [vmem:[%s3 + $0x30] sm:$0xff] %vm387, %v259
    %395 = vst.msk [vmem:[%s3 + $0x38] sm:$0xff] %vm387, %v264
    %396 = vst.msk [vmem:[%s3 + $0x40] sm:$0xff] %vm387, %v269
    %397 = vst.msk [vmem:[%s3 + $0x48] sm:$0xff] %vm387, %v274
    %398 = vst.msk [vmem:[%s3 + $0x50] sm:$0xff] %vm387, %v279
    %399 = vst.msk [vmem:[%s3 + $0x58] sm:$0xff] %vm387, %v284
    %400 = vst.msk [vmem:[%s3 + $0x60] sm:$0xff] %vm387, %v289
    %401 = vst.msk [vmem:[%s3 + $0x68] sm:$0xff] %vm387, %v294
    %402 = vst.msk [vmem:[%s3 + $0x70] sm:$0xff] %vm387, %v299
    %403 = vst.msk [vmem:[%s3 + $0x78] sm:$0xff] %vm387, %v304
    %404 = vst.msk [vmem:[%s3 + $0x80] sm:$0xff] %vm387, %v309
    %405 = vst.msk [vmem:[%s3 + $0x88] sm:$0xff] %vm387, %v314
    %406 = vst.msk [vmem:[%s3 + $0x90] sm:$0xff] %vm387, %v319
    %407 = vst.msk [vmem:[%s3 + $0x98] sm:$0xff] %vm387, %v324
    %408 = vst.msk [vmem:[%s3 + $0xa0] sm:$0xff] %vm387, %v329
    %409 = vst.msk [vmem:[%s3 + $0xa8] sm:$0xff] %vm387, %v334
    %410 = vst.msk [vmem:[%s3 + $0xb0] sm:$0xff] %vm387, %v339
    %411 = vst.msk [vmem:[%s3 + $0xb8] sm:$0xff] %vm387, %v344
    %412 = vst.msk [vmem:[%s3 + $0xc0] sm:$0xff] %vm387, %v349
    %413 = vst.msk [vmem:[%s3 + $0xc8] sm:$0xff] %vm387, %v354
    %414 = vst.msk [vmem:[%s3 + $0xd0] sm:$0xff] %vm387, %v359
    %415 = vst.msk [vmem:[%s3 + $0xd8] sm:$0xff] %vm387, %v364
    %416 = vst.msk [vmem:[%s3 + $0xe0] sm:$0xff] %vm387, %v369
    %417 = vst.msk [vmem:[%s3 + $0xe8] sm:$0xff] %vm387, %v374
    %418 = vst.msk [vmem:[%s3 + $0xf0] sm:$0xff] %vm387, %v379
    %419 = vst.msk [vmem:[%s3 + $0xf8] sm:$0xff] %vm387, %v384
    %420 = vxpose.xlu0.b32.start [1/16] %v229, 128
    %421 = vxpose.xlu0.b32.cont [2/16] %v234, 128
    %422 = vxpose.xlu0.b32.cont [3/16] %v239, 128
    %423 = vxpose.xlu0.b32.cont [4/16] %v244, 128
    %424 = vxpose.xlu0.b32.cont [5/16] %v249, 128
    %425 = vxpose.xlu0.b32.cont [6/16] %v254, 128
    %426 = vxpose.xlu0.b32.cont [7/16] %v259, 128
    %427 = vxpose.xlu0.b32.cont [8/16] %v264, 128
    %428 = vxpose.xlu0.b32.cont [9/16] %v269, 128
    %429 = vxpose.xlu0.b32.cont [10/16] %v274, 128
    %430 = vxpose.xlu0.b32.cont [11/16] %v279, 128
    %431 = vxpose.xlu0.b32.cont [12/16] %v284, 128
    %432 = vxpose.xlu0.b32.cont [13/16] %v289, 128
    %433 = vxpose.xlu0.b32.cont [14/16] %v294, 128
    %434 = vxpose.xlu0.b32.cont [15/16] %v299, 128
    %435 = vxpose.xlu0.b32.end [16/16] %v304, 128
    %v436 = vpop.trf.xlu0
    %v437 = vpop.trf.xlu0
    %v438 = vpop.trf.xlu0
    %v439 = vpop.trf.xlu0
    %v440 = vpop.trf.xlu0
    %v441 = vpop.trf.xlu0
    %v442 = vpop.trf.xlu0
    %v443 = vpop.trf.xlu0
    %v444 = vpop.trf.xlu0
    %v445 = vpop.trf.xlu0
    %v446 = vpop.trf.xlu0
    %v447 = vpop.trf.xlu0
    %v448 = vpop.trf.xlu0
    %v449 = vpop.trf.xlu0
    %v450 = vpop.trf.xlu0
    %v451 = vpop.trf.xlu0
    %452 = vxpose.xlu0.b32.start [1/16] %v309, 128
    %453 = vxpose.xlu0.b32.cont [2/16] %v314, 128
    %454 = vxpose.xlu0.b32.cont [3/16] %v319, 128
    %455 = vxpose.xlu0.b32.cont [4/16] %v324, 128
    %456 = vxpose.xlu0.b32.cont [5/16] %v329, 128
    %457 = vxpose.xlu0.b32.cont [6/16] %v334, 128
    %458 = vxpose.xlu0.b32.cont [7/16] %v339, 128
    %459 = vxpose.xlu0.b32.cont [8/16] %v344, 128
    %460 = vxpose.xlu0.b32.cont [9/16] %v349, 128
    %461 = vxpose.xlu0.b32.cont [10/16] %v354, 128
    %462 = vxpose.xlu0.b32.cont [11/16] %v359, 128
    %463 = vxpose.xlu0.b32.cont [12/16] %v364, 128
    %464 = vxpose.xlu0.b32.cont [13/16] %v369, 128
    %465 = vxpose.xlu0.b32.cont [14/16] %v374, 128
    %466 = vxpose.xlu0.b32.cont [15/16] %v379, 128
    %467 = vxpose.xlu0.b32.end [16/16] %v384, 128
    %v468 = vpop.trf.xlu0
    %v469 = vpop.trf.xlu0
    %v470 = vpop.trf.xlu0
    %v471 = vpop.trf.xlu0
    %v472 = vpop.trf.xlu0
    %v473 = vpop.trf.xlu0
    %v474 = vpop.trf.xlu0
    %v475 = vpop.trf.xlu0
    %v476 = vpop.trf.xlu0
    %v477 = vpop.trf.xlu0
    %v478 = vpop.trf.xlu0
    %v479 = vpop.trf.xlu0
    %v480 = vpop.trf.xlu0
    %v481 = vpop.trf.xlu0
    %v482 = vpop.trf.xlu0
    %v483 = vpop.trf.xlu0
    %v484 = vlaneseq
    %v485 = vshrl.u32 %v484, 7
    %v486 = vrot.slane %v436, 4
    %v487 = vmax.f32 %v436, %v486
    %v488 = vrot.slane %v487, 2
    %v489 = vmax.f32 %v487, %v488
    %v490 = vrot.slane %v489, 1
    %v491 = vmax.f32 %v489, %v490
    %v492 = vrot.slane %v468, 4
    %v493 = vmax.f32 %v468, %v492
    %v494 = vrot.slane %v493, 2
    %v495 = vmax.f32 %v493, %v494
    %v496 = vrot.slane %v495, 1
    %v497 = vmax.f32 %v495, %v496
    %vm498 = vcmp.eq.f32.partialorder %v436, %v491
    %vm499 = vcmp.eq.f32.partialorder %v468, %v497
    %v500 = vsel %vm498, %v485, 8
    %v501 = vsel %vm499, %v485, 8
    %v502 = vrot.slane %v500, 4
    %vm503 = vcmp.lt.s32.totalorder %v500, %v502
    %v504 = vsel %vm503, %v500, %v502
    %v505 = vrot.slane %v504, 2
    %vm506 = vcmp.lt.s32.totalorder %v504, %v505
    %v507 = vsel %vm506, %v504, %v505
    %v508 = vrot.slane %v507, 1
    %vm509 = vcmp.lt.s32.totalorder %v507, %v508
    %v510 = vsel %vm509, %v507, %v508
    %v511 = vrot.slane %v501, 4
    %vm512 = vcmp.lt.s32.totalorder %v501, %v511
    %v513 = vsel %vm512, %v501, %v511
    %v514 = vrot.slane %v513, 2
    %vm515 = vcmp.lt.s32.totalorder %v513, %v514
    %v516 = vsel %vm515, %v513, %v514
    %v517 = vrot.slane %v516, 1
    %vm518 = vcmp.lt.s32.totalorder %v516, %v517
    %v519 = vsel %vm518, %v516, %v517
    %vm520 = vcmp.eq.s32.totalorder %v485, %v510
    %vm521 = vcmp.eq.s32.totalorder %v485, %v519
    %v522 = vsel %vm520, -inf, %v436
    %v523 = vsel %vm521, -inf, %v468
    %v524 = vrot.slane %v522, 4
    %v525 = vmax.f32 %v522, %v524
    %v526 = vrot.slane %v525, 2
    %v527 = vmax.f32 %v525, %v526
    %v528 = vrot.slane %v527, 1
    %v529 = vmax.f32 %v527, %v528
    %v530 = vrot.slane %v523, 4
    %v531 = vmax.f32 %v523, %v530
    %v532 = vrot.slane %v531, 2
    %v533 = vmax.f32 %v531, %v532
    %v534 = vrot.slane %v533, 1
    %v535 = vmax.f32 %v533, %v534
    %vm536 = vcmp.eq.f32.partialorder %v522, %v529
    %vm537 = vcmp.eq.f32.partialorder %v523, %v535
    %v538 = vsel %vm536, %v485, 8
    %v539 = vsel %vm537, %v485, 8
    %v540 = vrot.slane %v538, 4
    %vm541 = vcmp.lt.s32.totalorder %v538, %v540
    %v542 = vsel %vm541, %v538, %v540
    %v543 = vrot.slane %v542, 2
    %vm544 = vcmp.lt.s32.totalorder %v542, %v543
    %v545 = vsel %vm544, %v542, %v543
    %v546 = vrot.slane %v545, 1
    %vm547 = vcmp.lt.s32.totalorder %v545, %v546
    %v548 = vsel %vm547, %v545, %v546
    %v549 = vrot.slane %v539, 4
    %vm550 = vcmp.lt.s32.totalorder %v539, %v549
    %v551 = vsel %vm550, %v539, %v549
    %v552 = vrot.slane %v551, 2
    %vm553 = vcmp.lt.s32.totalorder %v551, %v552
    %v554 = vsel %vm553, %v551, %v552
    %v555 = vrot.slane %v554, 1
    %vm556 = vcmp.lt.s32.totalorder %v554, %v555
    %v557 = vsel %vm556, %v554, %v555
    %vm558 = vcmask 1040384
    %v559 = vsel %vm558, %v491, %v529
    %v560 = vsel %vm558, %v497, %v535
    %v561 = vsel %vm558, %v510, %v548
    %v562 = vsel %vm558, %v519, %v557
    %vm563 = vcmask 1041408
    %v564 = vsel %vm563, %v559, -inf
    %v565 = vrot.slane %v564, 4
    %v566 = vmax.f32 %v564, %v565
    %v567 = vrot.slane %v566, 2
    %v568 = vmax.f32 %v566, %v567
    %v569 = vrot.slane %v568, 1
    %v570 = vmax.f32 %v568, %v569
    %v571 = vsel %vm563, %v560, -inf
    %v572 = vrot.slane %v571, 4
    %v573 = vmax.f32 %v571, %v572
    %v574 = vrot.slane %v573, 2
    %v575 = vmax.f32 %v573, %v574
    %v576 = vrot.slane %v575, 1
    %v577 = vmax.f32 %v575, %v576
    %v578 = vsub.f32 %v559, %v570
    %v579 = vsub.f32 %v560, %v577
    %v580 = vmul.f32 %v578, 1.442695
    %v581 = vpow.pop %v580
    %v582 = vmul.f32 %v579, 1.442695
    %v583 = vpow.pop %v582
    %v584 = vsel %vm563, %v581, 0.0
    %v585 = vrot.slane %v584, 4
    %v586 = vadd.f32 %v584, %v585
    %v587 = vrot.slane %v586, 2
    %v588 = vadd.f32 %v586, %v587
    %v589 = vrot.slane %v588, 1
    %v590 = vadd.f32 %v588, %v589
    %v591 = vsel %vm563, %v583, 0.0
    %v592 = vrot.slane %v591, 4
    %v593 = vadd.f32 %v591, %v592
    %v594 = vrot.slane %v593, 2
    %v595 = vadd.f32 %v593, %v594
    %v596 = vrot.slane %v595, 1
    %v597 = vadd.f32 %v595, %v596
    %v598 = vrcp.pop %v590
    %v599 = vmul.f32 %v581, %v598
    %v600 = vrcp.pop %v597
    %v601 = vmul.f32 %v583, %v600
    %v604 = vcombine.low %v599, %v601
    %v606 = vunpack.c.l.s4 1983009808
    %v607 = vunpack.c.0.s8 %v606
    %v608 = vlaneseq
    %v609 = vshrl.u32 %v608, 7
    %v610 = vsub.s32 %v607, %v609
    %v611 = vrot.slane %v604, %v610
    %613 = vst [vmem:[#allocation2] sm:$0xf] %v611
    %v614 = vcombine.low %v561, %v562
    %v616 = vunpack.c.l.s4 1983009808
    %v617 = vunpack.c.0.s8 %v616
    %v618 = vlaneseq
    %v619 = vshrl.u32 %v618, 7
    %v620 = vsub.s32 %v617, %v619
    %v621 = vrot.slane %v614, %v620
    %622 = vst [vmem:[#allocation4] sm:$0xf] %v621
    %vm623 = vcmp.eq.s32.totalorder %v561, 0
    %vm624 = vcmp.eq.s32.totalorder %v562, 0
    %vm625 = vcmp.eq.s32.totalorder %v561, 1
    %vm626 = vcmp.eq.s32.totalorder %v562, 1
    %vm627 = vcmp.eq.s32.totalorder %v561, 2
    %vm628 = vcmp.eq.s32.totalorder %v562, 2
    %vm629 = vcmp.eq.s32.totalorder %v561, 3
    %vm630 = vcmp.eq.s32.totalorder %v562, 3
    %vm631 = vcmp.eq.s32.totalorder %v561, 4
    %vm632 = vcmp.eq.s32.totalorder %v562, 4
    %vm633 = vcmp.eq.s32.totalorder %v561, 5
    %vm634 = vcmp.eq.s32.totalorder %v562, 5
    %vm635 = vcmp.eq.s32.totalorder %v561, 6
    %vm636 = vcmp.eq.s32.totalorder %v562, 6
    %vm637 = vcmp.eq.s32.totalorder %v561, 7
    %vm638 = vcmp.eq.s32.totalorder %v562, 7
    %vm639 = vmpackc.low %vm623, %vm623
    %vm640 = vmpackc.even %vm639, %vm639
    %vm641 = vmpackc.low %vm624, %vm624
    %vm642 = vmpackc.even %vm641, %vm641
    %vm643 = vmpackc.low %vm625, %vm625
    %vm644 = vmpackc.even %vm643, %vm643
    %vm645 = vmpackc.low %vm626, %vm626
    %vm646 = vmpackc.even %vm645, %vm645
    %vm647 = vmpackc.low %vm627, %vm627
    %vm648 = vmpackc.even %vm647, %vm647
    %vm649 = vmpackc.low %vm628, %vm628
    %vm650 = vmpackc.even %vm649, %vm649
    %vm651 = vmpackc.low %vm629, %vm629
    %vm652 = vmpackc.even %vm651, %vm651
    %vm653 = vmpackc.low %vm630, %vm630
    %vm654 = vmpackc.even %vm653, %vm653
    %vm655 = vmpackc.low %vm631, %vm631
    %vm656 = vmpackc.even %vm655, %vm655
    %vm657 = vmpackc.low %vm632, %vm632
    %vm658 = vmpackc.even %vm657, %vm657
    %vm659 = vmpackc.low %vm633, %vm633
    %vm660 = vmpackc.even %vm659, %vm659
    %vm661 = vmpackc.low %vm634, %vm634
    %vm662 = vmpackc.even %vm661, %vm661
    %vm663 = vmpackc.low %vm635, %vm635
    %vm664 = vmpackc.even %vm663, %vm663
    %vm665 = vmpackc.low %vm636, %vm636
    %vm666 = vmpackc.even %vm665, %vm665
    %vm667 = vmpackc.low %vm637, %vm637
    %vm668 = vmpackc.even %vm667, %vm667
    %vm669 = vmpackc.low %vm638, %vm638
    %vm670 = vmpackc.even %vm669, %vm669
    %v671 = vsel %vm640, 16843009, 0
    %v672 = vsel %vm642, 16843009, 0
    %v673 = vsel %vm644, 16843009, 0
    %v674 = vsel %vm646, 16843009, 0
    %v675 = vsel %vm648, 16843009, 0
    %v676 = vsel %vm650, 16843009, 0
    %v677 = vsel %vm652, 16843009, 0
    %v678 = vsel %vm654, 16843009, 0
    %v679 = vsel %vm656, 16843009, 0
    %v680 = vsel %vm658, 16843009, 0
    %v681 = vsel %vm660, 16843009, 0
    %v682 = vsel %vm662, 16843009, 0
    %v683 = vsel %vm664, 16843009, 0
    %v684 = vsel %vm666, 16843009, 0
    %v685 = vsel %vm668, 16843009, 0
    %v686 = vsel %vm670, 16843009, 0
    %v687 = vcombine.low %v671, %v672
    %v689 = vunpack.c.l.s4 1966171168
    %v690 = vunpack.c.0.s8 %v689
    %v691 = vlaneseq
    %v692 = vshrl.u32 %v691, 7
    %v693 = vsub.s32 %v690, %v692
    %v694 = vrot.slane %v687, %v693
    %v696 = vunpack.c.l.s4 1966171168
    %v697 = vunpack.c.0.s8 %v696
    %v698 = vlaneseq
    %v699 = vshrl.u32 %v698, 7
    %v700 = vsub.s32 %v697, %v699
    %v701 = vrot.slane %v694, %v700
    %v702 = vcombine.low %v673, %v674
    %v704 = vunpack.c.l.s4 1966171168
    %v705 = vunpack.c.0.s8 %v704
    %v706 = vlaneseq
    %v707 = vshrl.u32 %v706, 7
    %v708 = vsub.s32 %v705, %v707
    %v709 = vrot.slane %v702, %v708
    %v711 = vunpack.c.l.s4 1966171168
    %v712 = vunpack.c.0.s8 %v711
    %v713 = vlaneseq
    %v714 = vshrl.u32 %v713, 7
    %v715 = vsub.s32 %v712, %v714
    %v716 = vrot.slane %v709, %v715
    %v717 = vcombine.low %v675, %v676
    %v719 = vunpack.c.l.s4 1966171168
    %v720 = vunpack.c.0.s8 %v719
    %v721 = vlaneseq
    %v722 = vshrl.u32 %v721, 7
    %v723 = vsub.s32 %v720, %v722
    %v724 = vrot.slane %v717, %v723
    %v726 = vunpack.c.l.s4 1966171168
    %v727 = vunpack.c.0.s8 %v726
    %v728 = vlaneseq
    %v729 = vshrl.u32 %v728, 7
    %v730 = vsub.s32 %v727, %v729
    %v731 = vrot.slane %v724, %v730
    %v732 = vcombine.low %v677, %v678
    %v734 = vunpack.c.l.s4 1966171168
    %v735 = vunpack.c.0.s8 %v734
    %v736 = vlaneseq
    %v737 = vshrl.u32 %v736, 7
    %v738 = vsub.s32 %v735, %v737
    %v739 = vrot.slane %v732, %v738
    %v741 = vunpack.c.l.s4 1966171168
    %v742 = vunpack.c.0.s8 %v741
    %v743 = vlaneseq
    %v744 = vshrl.u32 %v743, 7
    %v745 = vsub.s32 %v742, %v744
    %v746 = vrot.slane %v739, %v745
    %v747 = vcombine.low %v679, %v680
    %v749 = vunpack.c.l.s4 1966171168
    %v750 = vunpack.c.0.s8 %v749
    %v751 = vlaneseq
    %v752 = vshrl.u32 %v751, 7
    %v753 = vsub.s32 %v750, %v752
    %v754 = vrot.slane %v747, %v753
    %v756 = vunpack.c.l.s4 1966171168
    %v757 = vunpack.c.0.s8 %v756
    %v758 = vlaneseq
    %v759 = vshrl.u32 %v758, 7
    %v760 = vsub.s32 %v757, %v759
    %v761 = vrot.slane %v754, %v760
    %v762 = vcombine.low %v681, %v682
    %v764 = vunpack.c.l.s4 1966171168
    %v765 = vunpack.c.0.s8 %v764
    %v766 = vlaneseq
    %v767 = vshrl.u32 %v766, 7
    %v768 = vsub.s32 %v765, %v767
    %v769 = vrot.slane %v762, %v768
    %v771 = vunpack.c.l.s4 1966171168
    %v772 = vunpack.c.0.s8 %v771
    %v773 = vlaneseq
    %v774 = vshrl.u32 %v773, 7
    %v775 = vsub.s32 %v772, %v774
    %v776 = vrot.slane %v769, %v775
    %v777 = vcombine.low %v683, %v684
    %v779 = vunpack.c.l.s4 1966171168
    %v780 = vunpack.c.0.s8 %v779
    %v781 = vlaneseq
    %v782 = vshrl.u32 %v781, 7
    %v783 = vsub.s32 %v780, %v782
    %v784 = vrot.slane %v777, %v783
    %v786 = vunpack.c.l.s4 1966171168
    %v787 = vunpack.c.0.s8 %v786
    %v788 = vlaneseq
    %v789 = vshrl.u32 %v788, 7
    %v790 = vsub.s32 %v787, %v789
    %v791 = vrot.slane %v784, %v790
    %v792 = vcombine.low %v685, %v686
    %v794 = vunpack.c.l.s4 1966171168
    %v795 = vunpack.c.0.s8 %v794
    %v796 = vlaneseq
    %v797 = vshrl.u32 %v796, 7
    %v798 = vsub.s32 %v795, %v797
    %v799 = vrot.slane %v792, %v798
    %v801 = vunpack.c.l.s4 1966171168
    %v802 = vunpack.c.0.s8 %v801
    %v803 = vlaneseq
    %v804 = vshrl.u32 %v803, 7
    %v805 = vsub.s32 %v802, %v804
    %v806 = vrot.slane %v799, %v805
    %vm807 = vcmask 1040384
    %vm808 = vsmask.f32 256
    %vm809 = vmand %vm807, %vm808
    %vm810 = vcmask 1041409
    %vm811 = vsmask.f32 1280
    %vm812 = vmand %vm810, %vm811
    %vm813 = vmor %vm812, %vm809
    %v814 = vld [vmem:[%s6] sm:$0x3]
    %v815 = vsel %vm813, %v701, %v814
    %816 = vst [vmem:[%s6] sm:$0x3] %v815
    %v817 = vld [vmem:[%s6 + $0x2] sm:$0x3]
    %v818 = vsel %vm813, %v716, %v817
    %819 = vst [vmem:[%s6 + $0x2] sm:$0x3] %v818
    %v820 = vld [vmem:[%s6 + $0x4] sm:$0x3]
    %v821 = vsel %vm813, %v731, %v820
    %822 = vst [vmem:[%s6 + $0x4] sm:$0x3] %v821
    %v823 = vld [vmem:[%s6 + $0x6] sm:$0x3]
    %v824 = vsel %vm813, %v746, %v823
    %825 = vst [vmem:[%s6 + $0x6] sm:$0x3] %v824
    %v826 = vld [vmem:[%s6 + $0x8] sm:$0x3]
    %v827 = vsel %vm813, %v761, %v826
    %828 = vst [vmem:[%s6 + $0x8] sm:$0x3] %v827
    %v829 = vld [vmem:[%s6 + $0xa] sm:$0x3]
    %v830 = vsel %vm813, %v776, %v829
    %831 = vst [vmem:[%s6 + $0xa] sm:$0x3] %v830
    %v832 = vld [vmem:[%s6 + $0xc] sm:$0x3]
    %v833 = vsel %vm813, %v791, %v832
    %834 = vst [vmem:[%s6 + $0xc] sm:$0x3] %v833
    %v835 = vld [vmem:[%s6 + $0xe] sm:$0x3]
    %v836 = vsel %vm813, %v806, %v835
    %837 = vst [vmem:[%s6 + $0xe] sm:$0x3] %v836
    // Predicated region
    $region14: #{tpu_custom_call.1} parent=1 // pred_check
      _
    $region15: #{tpu_custom_call.1} parent=1 // pred_check_branch
      %839 = sbr.rel (0) target = $region17
    $region16: #{tpu_custom_call.1} parent=1 // pred_region
      _
    $region17: #{tpu_custom_call.1} parent=1 // pred_fallthru
      _
    // Predicated region
    $region18: #{tpu_custom_call.1} parent=1 // pred_check
      _
    $region19: #{tpu_custom_call.1} parent=1 // pred_check_branch
      %841 = sbr.rel (0) target = $region21
    $region20: #{tpu_custom_call.1} parent=1 // pred_region
      %s843 = ssub.s32 64, 64
      %844 = vsyncadd [#allocation3], %s843
      %s846 = sshll.u32 [#allocation2], 4
      %s847 = int_to_ptr.vmem [resolvable:$true] %s846
      %849 = dma.vmem_to_hbm [thread:$0]  %s847, 64, %s4, [#allocation3]
    $region21: #{tpu_custom_call.1} parent=1 // pred_fallthru
      _
    // Predicated region
    $region22: #{tpu_custom_call.1} parent=1 // pred_check
      _
    $region23: #{tpu_custom_call.1} parent=1 // pred_check_branch
      %851 = sbr.rel (0) target = $region25
    $region24: #{tpu_custom_call.1} parent=1 // pred_region
      %s853 = ssub.s32 64, 64
      %854 = vsyncadd [#allocation5], %s853
      %s856 = sshll.u32 [#allocation4], 4
      %s857 = int_to_ptr.vmem [resolvable:$true] %s856
      %859 = dma.vmem_to_hbm [thread:$0]  %s857, 64, %s5, [#allocation5]
    $region25: #{tpu_custom_call.1} parent=1 // pred_fallthru
      _
    // Predicated region
    $region26: #{tpu_custom_call.1} parent=1 // pred_check
      _
    $region27: #{tpu_custom_call.1} parent=1 // pred_check_branch
      %861 = sbr.rel (0) target = $region29
    $region28: #{tpu_custom_call.1} parent=1 // pred_region
      _
    $region29: #{tpu_custom_call.1} parent=1 // pred_fallthru
      _
    // Predicated region
    $region30: #{tpu_custom_call.1} parent=1 // pred_check
      _
    $region31: #{tpu_custom_call.1} parent=1 // pred_check_branch
      %863 = sbr.rel (0) target = $region33
    $region32: #{tpu_custom_call.1} parent=1 // pred_region
      _
    $region33: #{tpu_custom_call.1} parent=1 // pred_fallthru
      _
    // Predicated region
    $region34: #{tpu_custom_call.1} parent=1 // pred_check
      _
    $region35: #{tpu_custom_call.1} parent=1 // pred_check_branch
      %865 = sbr.rel (0) target = $region37
    $region36: #{tpu_custom_call.1} parent=1 // pred_region
      %866 = dma.done [#allocation3], 64
    $region37: #{tpu_custom_call.1} parent=1 // pred_fallthru
      _
    // Predicated region
    $region38: #{tpu_custom_call.1} parent=1 // pred_check
      _
    $region39: #{tpu_custom_call.1} parent=1 // pred_check_branch
      %868 = sbr.rel (0) target = $region41
    $region40: #{tpu_custom_call.1} parent=1 // pred_region
      %869 = dma.done [#allocation5], 64
    $region41: #{tpu_custom_call.1} parent=1 // pred_fallthru
      _
    // Predicated region
    $region42: #{tpu_custom_call.1} parent=1 // pred_check
      _
    $region43: #{tpu_custom_call.1} parent=1 // pred_check_branch
      %871 = sbr.rel (0) target = $region45
    $region44: #{tpu_custom_call.1} parent=1 // pred_region
      _
    $region45: #{tpu_custom_call.1} parent=1 // pred_fallthru
      _
    %872 = vsyncpa [#allocation3], 1
    %873 = vsyncpa [#allocation5], 1

</llo_original>
